<compile_context>
chip_gen: v7x
topology: tpu7x:2x2x1
jax: 0.10.0
libtpu: 0.0.40
codegen_flags: <defaults>
</compile_context>

<pallas_src>
import functools

import jax
import jax.numpy as jnp
from jax.experimental import pallas as pl
from jax.experimental.pallas import tpu as pltpu


# ---------------------------------------------------------------------------
# Kernel
# ---------------------------------------------------------------------------
def _temporal_block_kernel(*refs, dilation, has_downsample):
    """One grid step = Bt whole batch elements, each a (C, L) time-on-lanes slab.

    refs (downsample variant):
      x_ref  : (Bt, Cin, L)    input slab, matmul dtype (f32 or bf16)
      w1_ref : (K, Cout, Cin)  conv1 weights, pre-split per tap
      b1_ref : (Cout, 1)       f32
      w2_ref : (K, Cout, Cout) conv2 weights, pre-split per tap
      b2_ref : (Cout, 1)       f32
      wd_ref : (Cout, Cin)     1x1 downsample weights   [only if has_downsample]
      bd_ref : (Cout, 1)       f32                      [only if has_downsample]
      o_ref  : (Bt, Cout, L)   f32 output slab
    """
    if has_downsample:
        x_ref, w1_ref, b1_ref, w2_ref, b2_ref, wd_ref, bd_ref, o_ref = refs
    else:
        x_ref, w1_ref, b1_ref, w2_ref, b2_ref, o_ref = refs
        wd_ref = bd_ref = None

    Bt, _, L = x_ref.shape
    K = w1_ref.shape[0]
    mm_dtype = x_ref.dtype

    # Hoisted causal-shift bookkeeping: one lane-index iota and one mask per
    # distinct shift, shared by both conv stages and every batch element
    # (JAX does not CSE broadcast_in_dim, so build these exactly once).
    shifts = [(K - 1 - k) * dilation for k in range(K)]
    t_idx = jax.lax.broadcasted_iota(jnp.int32, (1, L), 1)
    masks = {s: t_idx >= s for s in set(shifts) if s > 0}

    # Weights / biases are resident blocks; load them once per grid step.
    w1 = [w1_ref[k] for k in range(K)]
    w2 = [w2_ref[k] for k in range(K)]
    b1 = b1_ref[...].astype(jnp.float32)
    b2 = b2_ref[...].astype(jnp.float32)
    if has_downsample:
        wd = wd_ref[...]
        bd = bd_ref[...].astype(jnp.float32)

    def dilated_causal_conv(h, w_taps):
        # sum_k W_k @ shift_k(h): the causal shift is an XLU lane roll plus a
        # zero-fill mask (lanes with t < shift), accumulated over K small MXU
        # dots (no lane-axis tap concatenation). Accumulation is f32.
        acc = None
        for k in range(K):
            s = shifts[k]
            if s == 0:
                hk = h
            else:
                hk = jnp.where(masks[s], pltpu.roll(h, shift=s, axis=1), 0.0)
                hk = hk.astype(h.dtype)
            y = jnp.dot(w_taps[k], hk, preferred_element_type=jnp.float32)
            acc = y if acc is None else acc + y
        return acc

    for b in range(Bt):                      # static unroll over the batch tile
        xb = x_ref[b]                                          # (Cin, L)
        # conv1 (causal dilated) -> chomp -> ReLU ; dropout1 = identity
        h1 = jnp.maximum(dilated_causal_conv(xb, w1) + b1, 0.0)
        # conv2 -> chomp -> ReLU ; dropout2 = identity
        h2 = jnp.maximum(dilated_causal_conv(h1.astype(mm_dtype), w2) + b2, 0.0)
        # residual: 1x1 conv when n_inputs != n_outputs else identity
        if has_downsample:
            res = jnp.dot(wd, xb, preferred_element_type=jnp.float32) + bd
        else:
            res = xb.astype(jnp.float32)
        o_ref[b] = jnp.maximum(h2 + res, 0.0).astype(o_ref.dtype)


# ---------------------------------------------------------------------------
# VMEM / tile sizing helpers (padding- and generation-aware)
# ---------------------------------------------------------------------------
_SUBLANE_PAD = {1: 32, 2: 16, 4: 8}


def _round_up(x, m):
    return -(-x // m) * m


def _padded_tile_bytes(rows, cols, itemsize):
    """Bytes of a (rows, cols) slab after TPU (sublane, 128-lane) padding."""
    sub = _SUBLANE_PAD.get(itemsize, 8)
    return _round_up(max(rows, 1), sub) * _round_up(max(cols, 1), 128) * itemsize


def _vmem_need_bytes(bt, *, Cin, Cout, L, K, x_itemsize, has_downsample):
    """Padding-aware VMEM footprint of one grid step: double-buffered pipeline
    blocks plus the live f32 intermediates Mosaic will materialize."""
    x_blk = bt * _padded_tile_bytes(Cin, L, x_itemsize)
    o_blk = bt * _padded_tile_bytes(Cout, L, 4)
    w_blk = (K * _padded_tile_bytes(Cout, Cin, x_itemsize)
             + K * _padded_tile_bytes(Cout, Cout, x_itemsize)
             + 2 * _padded_tile_bytes(Cout, 1, 4))
    if has_downsample:
        w_blk += (_padded_tile_bytes(Cout, Cin, x_itemsize)
                  + _padded_tile_bytes(Cout, 1, 4))
    inter = bt * (2 * _padded_tile_bytes(Cin, L, 4)
                  + 4 * _padded_tile_bytes(Cout, L, 4))
    return 2 * (x_blk + o_blk + w_blk) + inter


def _vmem_cap_bytes():
    """Generation-aware working cap (~3/4 of physical VMEM per TensorCore):
    ~96 MiB on v5e/v6e (128 MiB physical), ~48 MiB on v7x (64 MiB)."""
    physical = 128 * 1024 * 1024
    try:
        info = pltpu.get_tpu_info()
        physical = int(getattr(info, "vmem_capacity_bytes", physical))
    except Exception:
        pass
    return (physical * 3) // 4


def _pick_batch_tile(N, budget, need_fn):
    """Largest Bt dividing N that still leaves >= 2 grid steps (mandatory for
    v7x dual-TC sharding, ideally >= 4 for DMA/compute pipelining) and whose
    padded footprint fits the VMEM budget."""
    target_steps = 4 if N >= 4 else (2 if N >= 2 else 1)
    divisors = sorted((d for d in range(1, N + 1) if N % d == 0), reverse=True)
    for bt in divisors:
        if N // bt >= target_steps and need_fn(bt) <= budget:
            return bt
    for bt in divisors:                      # fallback: ignore the step target
        if need_fn(bt) <= budget:
            return bt
    return 1


# ---------------------------------------------------------------------------
# Wrapper
# ---------------------------------------------------------------------------
def temporal_block_forward(x_ncl, params, *, kernel_size, dilation,
                           matmul_dtype=jnp.float32):
    """TemporalBlock forward. x_ncl: (N, Cin, L) float32 (PyTorch NCL layout).

    params: w1 (Cout,Cin,K), b1 (Cout,), w2 (Cout,Cout,K), b2 (Cout,),
            wd (Cout,Cin,1) or None, bd (Cout,) or None.
    matmul_dtype=jnp.bfloat16 feeds the MXU with bf16 operands (v6e/v7x fast
    path, halves activation/weight DMA); accumulation/bias/ReLU stay in f32.
    Returns (N, Cout, L) float32.
    """
    N, Cin, L = x_ncl.shape
    K = kernel_size
    Cout = params["w1"].shape[0]
    has_downsample = params.get("wd") is not None
    if not has_downsample and Cin != Cout:
        raise ValueError("identity residual requires n_inputs == n_outputs")

    mm = jnp.dtype(matmul_dtype)
    x_isz = mm.itemsize

    # Native NCL layout: channels on sublanes, time on lanes -> no relayout.
    x = x_ncl.astype(mm)
    # PyTorch Conv1d weights are (Cout, Cin, K); pre-split per tap: (K, Cout, Cin).
    w1 = jnp.transpose(params["w1"], (2, 0, 1)).astype(mm)
    w2 = jnp.transpose(params["w2"], (2, 0, 1)).astype(mm)
    b1 = params["b1"].reshape(Cout, 1).astype(jnp.float32)
    b2 = params["b2"].reshape(Cout, 1).astype(jnp.float32)

    operands = [x, w1, b1, w2, b2]
    weight_specs = [
        pl.BlockSpec((K, Cout, Cin), lambda i: (0, 0, 0)),
        pl.BlockSpec((Cout, 1), lambda i: (0, 0)),
        pl.BlockSpec((K, Cout, Cout), lambda i: (0, 0, 0)),
        pl.BlockSpec((Cout, 1), lambda i: (0, 0)),
    ]
    if has_downsample:
        wd = params["wd"][:, :, 0].astype(mm)               # (Cout, Cin)
        bd = params["bd"].reshape(Cout, 1).astype(jnp.float32)
        operands += [wd, bd]
        weight_specs += [pl.BlockSpec((Cout, Cin), lambda i: (0, 0)),
                         pl.BlockSpec((Cout, 1), lambda i: (0, 0))]

    # Padding- and generation-aware batch tile + VMEM limit.
    cap = _vmem_cap_bytes()
    need_fn = functools.partial(_vmem_need_bytes, Cin=Cin, Cout=Cout, L=L, K=K,
                                x_itemsize=x_isz, has_downsample=has_downsample)
    Bt = _pick_batch_tile(N, cap - (4 << 20), need_fn)
    need_bytes = need_fn(Bt)
    vmem_limit = int(min(cap, max(2 * need_bytes, 32 << 20)))
    grid = (N // Bt,)

    mac = K * Cin * Cout + K * Cout * Cout + (Cin * Cout if has_downsample else 0)
    flops = 2 * N * L * mac + 4 * N * L * Cout
    bytes_accessed = (N * L * (Cin * x_isz + Cout * 4)
                      + (K * Cin * Cout + K * Cout * Cout) * x_isz
                      + (Cin * Cout * x_isz if has_downsample else 0)
                      + 3 * Cout * 4)

    kernel = functools.partial(_temporal_block_kernel, dilation=dilation,
                               has_downsample=has_downsample)

    return pl.pallas_call(
        kernel,
        out_shape=jax.ShapeDtypeStruct((N, Cout, L), jnp.float32),
        grid_spec=pltpu.PrefetchScalarGridSpec(
            num_scalar_prefetch=0,
            grid=grid,
            in_specs=[pl.BlockSpec((Bt, Cin, L), lambda i: (i, 0, 0))]
                     + weight_specs,
            out_specs=pl.BlockSpec((Bt, Cout, L), lambda i: (i, 0, 0)),
        ),
        compiler_params=pltpu.CompilerParams(
            dimension_semantics=("parallel",),       # batch tiles independent
            vmem_limit_bytes=vmem_limit),
        cost_estimate=pl.CostEstimate(
            flops=int(flops), transcendentals=0,
            bytes_accessed=int(bytes_accessed)),
    )(*operands)


# ---------------------------------------------------------------------------
# Pure-JAX reference (matches the PyTorch TemporalBlock forward)
# ---------------------------------------------------------------------------
def _reference_forward(x_ncl, params, *, kernel_size, dilation):
    P = (kernel_size - 1) * dilation

    def conv1d(x, w, b, dil, pad):
        y = jax.lax.conv_general_dilated(
            x, w, window_strides=(1,), padding=[(pad, pad)],
            rhs_dilation=(dil,), dimension_numbers=("NCH", "OIH", "NCH"))
        return y + b[None, :, None]

    def chomp(y):
        return y[:, :, :-P] if P > 0 else y

    h = jax.nn.relu(chomp(conv1d(x_ncl, params["w1"], params["b1"], dilation, P)))
    h = jax.nn.relu(chomp(conv1d(h, params["w2"], params["b2"], dilation, P)))
    if params.get("wd") is not None:
        res = conv1d(x_ncl, params["wd"], params["bd"], 1, 0)
    else:
        res = x_ncl
    return jax.nn.relu(h + res)


if __name__ == "__main__":
    key = jax.random.PRNGKey(0)

    # ---- Config 1: TemporalBlock(n_inputs=4, n_outputs=8, kernel_size=3,
    #      stride=1, dilation=2, padding=(3-1)*2=4, dropout=0.0)  -> downsample path
    N, Cin, Cout, L, K, dil = 2, 4, 8, 16, 3, 2
    k1, k2, k3, k4, k5, k6, kx, key = jax.random.split(key, 8)
    s1 = 1.0 / (Cin * K) ** 0.5
    s2 = 1.0 / (Cout * K) ** 0.5
    sd = 1.0 / Cin ** 0.5
    params = {
        "w1": jax.random.uniform(k1, (Cout, Cin, K), jnp.float32, -s1, s1),
        "b1": jax.random.uniform(k2, (Cout,), jnp.float32, -s1, s1),
        "w2": jax.random.uniform(k3, (Cout, Cout, K), jnp.float32, -s2, s2),
        "b2": jax.random.uniform(k4, (Cout,), jnp.float32, -s2, s2),
        "wd": jax.random.uniform(k5, (Cout, Cin, 1), jnp.float32, -sd, sd),
        "bd": jax.random.uniform(k6, (Cout,), jnp.float32, -sd, sd),
    }
    x = jax.random.normal(kx, (N, Cin, L), jnp.float32)

    ref = jax.block_until_ready(
        _reference_forward(x, params, kernel_size=K, dilation=dil))

    out = jax.block_until_ready(
        temporal_block_forward(x, params, kernel_size=K, dilation=dil))
    assert out.shape == (N, Cout, L), out.shape
    assert jnp.allclose(out, ref, atol=1e-5, rtol=1e-5), float(
        jnp.max(jnp.abs(out - ref)))

    # bf16 MXU operands (v6e/v7x fast path); accumulation stays f32.
    out_bf16 = jax.block_until_ready(
        temporal_block_forward(x, params, kernel_size=K, dilation=dil,
                               matmul_dtype=jnp.bfloat16))
    assert jnp.allclose(out_bf16, ref, atol=5e-2, rtol=5e-2), float(
        jnp.max(jnp.abs(out_bf16 - ref)))

    # ---- Config 2: n_inputs == n_outputs -> identity residual (no 1x1 conv) ----
    N2, C2, L2, K2, d2 = 4, 8, 32, 3, 1
    j1, j2, j3, j4, jx, key = jax.random.split(key, 6)
    t1 = 1.0 / (C2 * K2) ** 0.5
    params2 = {
        "w1": jax.random.uniform(j1, (C2, C2, K2), jnp.float32, -t1, t1),
        "b1": jax.random.uniform(j2, (C2,), jnp.float32, -t1, t1),
        "w2": jax.random.uniform(j3, (C2, C2, K2), jnp.float32, -t1, t1),
        "b2": jax.random.uniform(j4, (C2,), jnp.float32, -t1, t1),
        "wd": None, "bd": None,
    }
    x2 = jax.random.normal(jx, (N2, C2, L2), jnp.float32)

    out2 = jax.block_until_ready(
        temporal_block_forward(x2, params2, kernel_size=K2, dilation=d2))
    ref2 = jax.block_until_ready(
        _reference_forward(x2, params2, kernel_size=K2, dilation=d2))
    assert out2.shape == (N2, C2, L2), out2.shape
    assert jnp.allclose(out2, ref2, atol=1e-5, rtol=1e-5), float(
        jnp.max(jnp.abs(out2 - ref2)))

    print("KERNEL_OK")
</pallas_src>

<mosaic_0001>
module attributes {stable_mosaic.version = 11 : i64} {
  func.func @_temporal_block_kernel(%arg0: i32, %arg1: memref<1x4x16xf32, #tpu.memory_space<vmem>>, %arg2: memref<3x8x4xf32, #tpu.memory_space<vmem>>, %arg3: memref<8x1xf32, #tpu.memory_space<vmem>>, %arg4: memref<3x8x8xf32, #tpu.memory_space<vmem>>, %arg5: memref<8x1xf32, #tpu.memory_space<vmem>>, %arg6: memref<8x4xf32, #tpu.memory_space<vmem>>, %arg7: memref<8x1xf32, #tpu.memory_space<vmem>>, %arg8: memref<1x8x16xf32, #tpu.memory_space<vmem>>) attributes {dimension_semantics = [#tpu.dimension_semantics<parallel>], iteration_bounds = array<i64: 2>, scalar_prefetch = 0 : i64, scratch_operands = 0 : i64, tpu.core_type = #tpu.core_type<tc>, window_params = [{transform_indices = @transform_0, window_bounds = array<i64: 1, 4, 16>}, {pipeline_mode = #tpu.pipeline_mode<synchronous>, transform_indices = @transform_1, window_bounds = array<i64: 3, 8, 4>}, {pipeline_mode = #tpu.pipeline_mode<synchronous>, transform_indices = @transform_2, window_bounds = array<i64: 8, 1>}, {pipeline_mode = #tpu.pipeline_mode<synchronous>, transform_indices = @transform_3, window_bounds = array<i64: 3, 8, 8>}, {pipeline_mode = #tpu.pipeline_mode<synchronous>, transform_indices = @transform_4, window_bounds = array<i64: 8, 1>}, {pipeline_mode = #tpu.pipeline_mode<synchronous>, transform_indices = @transform_5, window_bounds = array<i64: 8, 4>}, {pipeline_mode = #tpu.pipeline_mode<synchronous>, transform_indices = @transform_6, window_bounds = array<i64: 8, 1>}, {transform_indices = @transform_7, window_bounds = array<i64: 1, 8, 16>}]} {
    %0 = tpu.iota {dimensions = array<i32: 1>} : vector<1x16xi32>
    %c2_i32 = arith.constant 2 : i32
    %1 = vector.broadcast %c2_i32 : i32 to vector<1x16xi32>
    %2 = arith.cmpi sge, %0, %1 : vector<1x16xi32>
    %c4_i32 = arith.constant 4 : i32
    %3 = vector.broadcast %c4_i32 : i32 to vector<1x16xi32>
    %4 = arith.cmpi sge, %0, %3 : vector<1x16xi32>
    %c0 = arith.constant 0 : index
    %c0_0 = arith.constant 0 : index
    %c0_1 = arith.constant 0 : index
    %5 = vector.load %arg2[%c0, %c0_0, %c0_1] : memref<3x8x4xf32, #tpu.memory_space<vmem>>, vector<1x8x4xf32>
    %6 = vector.shape_cast %5 : vector<1x8x4xf32> to vector<8x4xf32>
    %c1 = arith.constant 1 : index
    %c0_2 = arith.constant 0 : index
    %c0_3 = arith.constant 0 : index
    %7 = vector.load %arg2[%c1, %c0_2, %c0_3] : memref<3x8x4xf32, #tpu.memory_space<vmem>>, vector<1x8x4xf32>
    %8 = vector.shape_cast %7 : vector<1x8x4xf32> to vector<8x4xf32>
    %c2 = arith.constant 2 : index
    %c0_4 = arith.constant 0 : index
    %c0_5 = arith.constant 0 : index
    %9 = vector.load %arg2[%c2, %c0_4, %c0_5] : memref<3x8x4xf32, #tpu.memory_space<vmem>>, vector<1x8x4xf32>
    %10 = vector.shape_cast %9 : vector<1x8x4xf32> to vector<8x4xf32>
    %c0_6 = arith.constant 0 : index
    %c0_7 = arith.constant 0 : index
    %c0_8 = arith.constant 0 : index
    %11 = vector.load %arg4[%c0_6, %c0_7, %c0_8] : memref<3x8x8xf32, #tpu.memory_space<vmem>>, vector<1x8x8xf32>
    %12 = vector.shape_cast %11 : vector<1x8x8xf32> to vector<8x8xf32>
    %c1_9 = arith.constant 1 : index
    %c0_10 = arith.constant 0 : index
    %c0_11 = arith.constant 0 : index
    %13 = vector.load %arg4[%c1_9, %c0_10, %c0_11] : memref<3x8x8xf32, #tpu.memory_space<vmem>>, vector<1x8x8xf32>
    %14 = vector.shape_cast %13 : vector<1x8x8xf32> to vector<8x8xf32>
    %c2_12 = arith.constant 2 : index
    %c0_13 = arith.constant 0 : index
    %c0_14 = arith.constant 0 : index
    %15 = vector.load %arg4[%c2_12, %c0_13, %c0_14] : memref<3x8x8xf32, #tpu.memory_space<vmem>>, vector<1x8x8xf32>
    %16 = vector.shape_cast %15 : vector<1x8x8xf32> to vector<8x8xf32>
    %c0_15 = arith.constant 0 : index
    %c0_16 = arith.constant 0 : index
    %17 = vector.load %arg3[%c0_15, %c0_16] : memref<8x1xf32, #tpu.memory_space<vmem>>, vector<8x1xf32>
    %c0_17 = arith.constant 0 : index
    %c0_18 = arith.constant 0 : index
    %18 = vector.load %arg5[%c0_17, %c0_18] : memref<8x1xf32, #tpu.memory_space<vmem>>, vector<8x1xf32>
    %c0_19 = arith.constant 0 : index
    %c0_20 = arith.constant 0 : index
    %19 = vector.load %arg6[%c0_19, %c0_20] : memref<8x4xf32, #tpu.memory_space<vmem>>, vector<8x4xf32>
    %c0_21 = arith.constant 0 : index
    %c0_22 = arith.constant 0 : index
    %20 = vector.load %arg7[%c0_21, %c0_22] : memref<8x1xf32, #tpu.memory_space<vmem>>, vector<8x1xf32>
    %c0_23 = arith.constant 0 : index
    %c0_24 = arith.constant 0 : index
    %c0_25 = arith.constant 0 : index
    %21 = vector.load %arg1[%c0_23, %c0_24, %c0_25] : memref<1x4x16xf32, #tpu.memory_space<vmem>>, vector<1x4x16xf32>
    %22 = vector.shape_cast %21 : vector<1x4x16xf32> to vector<4x16xf32>
    %c4_i32_26 = arith.constant 4 : i32
    %23 = tpu.dynamic_rotate %22 by %c4_i32_26 dim 1 : vector<4x16xf32>, i32 -> vector<4x16xf32>
    %cst = arith.constant 0.000000e+00 : f32
    %24 = vector.shape_cast %4 : vector<1x16xi1> to vector<1x16xi1>
    %25 = vector.broadcast %24 : vector<1x16xi1> to vector<4x16xi1>
    %26 = vector.broadcast %cst : f32 to vector<4x16xf32>
    %27 = arith.select %25, %23, %26 : vector<4x16xi1>, vector<4x16xf32>
    %cst_27 = arith.constant dense<0.000000e+00> : vector<8x16xf32>
    %28 = tpu.matmul %6, %27, %cst_27 {dimension_numbers = #tpu.dot_dimension_numbers<[1], [0], [0], [1], [0, 0, 1, 1], [], []>} : vector<8x4xf32>, vector<4x16xf32>, vector<8x16xf32> -> vector<8x16xf32>
    %c2_i32_28 = arith.constant 2 : i32
    %29 = tpu.dynamic_rotate %22 by %c2_i32_28 dim 1 : vector<4x16xf32>, i32 -> vector<4x16xf32>
    %cst_29 = arith.constant 0.000000e+00 : f32
    %30 = vector.shape_cast %2 : vector<1x16xi1> to vector<1x16xi1>
    %31 = vector.broadcast %30 : vector<1x16xi1> to vector<4x16xi1>
    %32 = vector.broadcast %cst_29 : f32 to vector<4x16xf32>
    %33 = arith.select %31, %29, %32 : vector<4x16xi1>, vector<4x16xf32>
    %cst_30 = arith.constant dense<0.000000e+00> : vector<8x16xf32>
    %34 = tpu.matmul %8, %33, %cst_30 {dimension_numbers = #tpu.dot_dimension_numbers<[1], [0], [0], [1], [0, 0, 1, 1], [], []>} : vector<8x4xf32>, vector<4x16xf32>, vector<8x16xf32> -> vector<8x16xf32>
    %35 = arith.addf %28, %34 : vector<8x16xf32>
    %cst_31 = arith.constant dense<0.000000e+00> : vector<8x16xf32>
    %36 = tpu.matmul %10, %22, %cst_31 {dimension_numbers = #tpu.dot_dimension_numbers<[1], [0], [0], [1], [0, 0, 1, 1], [], []>} : vector<8x4xf32>, vector<4x16xf32>, vector<8x16xf32> -> vector<8x16xf32>
    %37 = arith.addf %35, %36 : vector<8x16xf32>
    %38 = vector.broadcast %17 : vector<8x1xf32> to vector<8x16xf32>
    %39 = arith.addf %37, %38 : vector<8x16xf32>
    %cst_32 = arith.constant 0.000000e+00 : f32
    %40 = vector.broadcast %cst_32 : f32 to vector<8x16xf32>
    %41 = arith.maximumf %39, %40 : vector<8x16xf32>
    %c4_i32_33 = arith.constant 4 : i32
    %42 = tpu.dynamic_rotate %41 by %c4_i32_33 dim 1 : vector<8x16xf32>, i32 -> vector<8x16xf32>
    %cst_34 = arith.constant 0.000000e+00 : f32
    %43 = vector.shape_cast %4 : vector<1x16xi1> to vector<1x16xi1>
    %44 = vector.broadcast %43 : vector<1x16xi1> to vector<8x16xi1>
    %45 = vector.broadcast %cst_34 : f32 to vector<8x16xf32>
    %46 = arith.select %44, %42, %45 : vector<8x16xi1>, vector<8x16xf32>
    %cst_35 = arith.constant dense<0.000000e+00> : vector<8x16xf32>
    %47 = tpu.matmul %12, %46, %cst_35 {dimension_numbers = #tpu.dot_dimension_numbers<[1], [0], [0], [1], [0, 0, 1, 1], [], []>} : vector<8x8xf32>, vector<8x16xf32>, vector<8x16xf32> -> vector<8x16xf32>
    %c2_i32_36 = arith.constant 2 : i32
    %48 = tpu.dynamic_rotate %41 by %c2_i32_36 dim 1 : vector<8x16xf32>, i32 -> vector<8x16xf32>
    %cst_37 = arith.constant 0.000000e+00 : f32
    %49 = vector.shape_cast %2 : vector<1x16xi1> to vector<1x16xi1>
    %50 = vector.broadcast %49 : vector<1x16xi1> to vector<8x16xi1>
    %51 = vector.broadcast %cst_37 : f32 to vector<8x16xf32>
    %52 = arith.select %50, %48, %51 : vector<8x16xi1>, vector<8x16xf32>
    %cst_38 = arith.constant dense<0.000000e+00> : vector<8x16xf32>
    %53 = tpu.matmul %14, %52, %cst_38 {dimension_numbers = #tpu.dot_dimension_numbers<[1], [0], [0], [1], [0, 0, 1, 1], [], []>} : vector<8x8xf32>, vector<8x16xf32>, vector<8x16xf32> -> vector<8x16xf32>
    %54 = arith.addf %47, %53 : vector<8x16xf32>
    %cst_39 = arith.constant dense<0.000000e+00> : vector<8x16xf32>
    %55 = tpu.matmul %16, %41, %cst_39 {dimension_numbers = #tpu.dot_dimension_numbers<[1], [0], [0], [1], [0, 0, 1, 1], [], []>} : vector<8x8xf32>, vector<8x16xf32>, vector<8x16xf32> -> vector<8x16xf32>
    %56 = arith.addf %54, %55 : vector<8x16xf32>
    %57 = vector.broadcast %18 : vector<8x1xf32> to vector<8x16xf32>
    %58 = arith.addf %56, %57 : vector<8x16xf32>
    %cst_40 = arith.constant 0.000000e+00 : f32
    %59 = vector.broadcast %cst_40 : f32 to vector<8x16xf32>
    %60 = arith.maximumf %58, %59 : vector<8x16xf32>
    %cst_41 = arith.constant dense<0.000000e+00> : vector<8x16xf32>
    %61 = tpu.matmul %19, %22, %cst_41 {dimension_numbers = #tpu.dot_dimension_numbers<[1], [0], [0], [1], [0, 0, 1, 1], [], []>} : vector<8x4xf32>, vector<4x16xf32>, vector<8x16xf32> -> vector<8x16xf32>
    %62 = vector.broadcast %20 : vector<8x1xf32> to vector<8x16xf32>
    %63 = arith.addf %61, %62 : vector<8x16xf32>
    %64 = arith.addf %60, %63 : vector<8x16xf32>
    %cst_42 = arith.constant 0.000000e+00 : f32
    %65 = vector.broadcast %cst_42 : f32 to vector<8x16xf32>
    %66 = arith.maximumf %64, %65 : vector<8x16xf32>
    %c0_43 = arith.constant 0 : index
    %c0_44 = arith.constant 0 : index
    %c0_45 = arith.constant 0 : index
    %67 = vector.load %arg8[%c0_43, %c0_44, %c0_45] : memref<1x8x16xf32, #tpu.memory_space<vmem>>, vector<1x8x16xf32>
    %68 = vector.shape_cast %67 : vector<1x8x16xf32> to vector<8x16xf32>
    %69 = vector.shape_cast %66 : vector<8x16xf32> to vector<1x8x16xf32>
    tpu.vector_store %arg8[%c0_43, %c0_44, %c0_45], %69 {strides = array<i32>} : memref<1x8x16xf32, #tpu.memory_space<vmem>>, vector<1x8x16xf32>,
    return
  }
  func.func @transform_0(%arg0: i32) -> (i32, i32, i32) {
    %c0_i32 = arith.constant 0 : i32
    %c0_i32_0 = arith.constant 0 : i32
    %c0_i32_1 = arith.constant 0 : i32
    return %arg0, %c0_i32, %c0_i32_0 : i32, i32, i32
  }
  func.func @transform_1(%arg0: i32) -> (i32, i32, i32) {
    %c0_i32 = arith.constant 0 : i32
    %c0_i32_0 = arith.constant 0 : i32
    %c0_i32_1 = arith.constant 0 : i32
    %c0_i32_2 = arith.constant 0 : i32
    return %c0_i32, %c0_i32_0, %c0_i32_1 : i32, i32, i32
  }
  func.func @transform_2(%arg0: i32) -> (i32, i32) {
    %c0_i32 = arith.constant 0 : i32
    %c0_i32_0 = arith.constant 0 : i32
    %c0_i32_1 = arith.constant 0 : i32
    return %c0_i32, %c0_i32_0 : i32, i32
  }
  func.func @transform_3(%arg0: i32) -> (i32, i32, i32) {
    %c0_i32 = arith.constant 0 : i32
    %c0_i32_0 = arith.constant 0 : i32
    %c0_i32_1 = arith.constant 0 : i32
    %c0_i32_2 = arith.constant 0 : i32
    return %c0_i32, %c0_i32_0, %c0_i32_1 : i32, i32, i32
  }
  func.func @transform_4(%arg0: i32) -> (i32, i32) {
    %c0_i32 = arith.constant 0 : i32
    %c0_i32_0 = arith.constant 0 : i32
    %c0_i32_1 = arith.constant 0 : i32
    return %c0_i32, %c0_i32_0 : i32, i32
  }
  func.func @transform_5(%arg0: i32) -> (i32, i32) {
    %c0_i32 = arith.constant 0 : i32
    %c0_i32_0 = arith.constant 0 : i32
    %c0_i32_1 = arith.constant 0 : i32
    return %c0_i32, %c0_i32_0 : i32, i32
  }
  func.func @transform_6(%arg0: i32) -> (i32, i32) {
    %c0_i32 = arith.constant 0 : i32
    %c0_i32_0 = arith.constant 0 : i32
    %c0_i32_1 = arith.constant 0 : i32
    return %c0_i32, %c0_i32_0 : i32, i32
  }
  func.func @transform_7(%arg0: i32) -> (i32, i32, i32) {
    %c0_i32 = arith.constant 0 : i32
    %c0_i32_0 = arith.constant 0 : i32
    %c0_i32_1 = arith.constant 0 : i32
    return %arg0, %c0_i32, %c0_i32_0 : i32, i32, i32
  }
}

</mosaic_0001>

<llo_original>
// kernel: tpu_custom_call.1
$region0: #{tpu_custom_call.1}
  #allocation0 [shape = 'u32[]', space=smem, size = 0x4, offset = 0x4, fixed_abs, tag = 'smem constant byte address 0x4 - core index']
  #allocation1 [shape = 'u32[144,128]{1,0:T(1,128)}', space=vmem, size = 0x12000, scoped, tag = 'internal scratch']
  %s0 = inlined_call_operand.vmem [shape: f32[2,4,16], index: 0, kind: input, shape index: {}]
  %s1 = inlined_call_operand.vmem [shape: f32[3,8,4], index: 1, kind: input, shape index: {}]
  %s2 = inlined_call_operand.vmem [shape: f32[8,1], index: 2, kind: input, shape index: {}]
  %s3 = inlined_call_operand.vmem [shape: f32[3,8,8], index: 3, kind: input, shape index: {}]
  %s4 = inlined_call_operand.vmem [shape: f32[8,1], index: 4, kind: input, shape index: {}]
  %s5 = inlined_call_operand.vmem [shape: f32[8,4], index: 5, kind: input, shape index: {}]
  %s6 = inlined_call_operand.vmem [shape: f32[8,1], index: 6, kind: input, shape index: {}]
  %s7 = inlined_call_operand.hbm [shape: f32[2,8,16], index: 7, kind: output, shape index: {}]
  %s8 = sld [smem:[#allocation0]]
  $region61: #{tpu_custom_call.1} parent=0
    _
  %s10 = ssub.s32 1, %s8
  %s11 = scalar_select 0, %s10, %s8
  $region1: #{tpu_custom_call.1} parent=0
    #allocation2 [shape = 'u8[8192]{0}', space=vmem, size = 0x2000, scoped, tag = 'output window, operand 0']
    #allocation3 [shape = 's32[2]{0}', space=sflag, size = 0x8, scoped, tag = 'scoped memory for tpu_custom_call.1']
    %12 = vsyncpa [#allocation3], 0
    %s13 = scalar_lea.sflag [#allocation3], 1
    %14 = vsyncpa %s13, 0
    loop: start=0, step=1, limit=4
    $region2: #{tpu_custom_call.1} parent=1 // loop_pre_header
      _
    $region3: #{tpu_custom_call.1} parent=1 // loop_header
      %s16 = sphi 0, %s20
      %p17 = scmp.ge.s32.totalorder %s16, 4
      %s26 = sphi 0, %s28
      %s29 = sphi 0, %s26
      %s30 = sphi 0, %s29
      %s46 = sphi 0, %s30
      %s50 = sphi 0, %s50
      %s52 = sphi 0, %s50
      %s53 = sphi 0, %s52
      %s67 = sphi 0, %s53
      %s71 = sphi 0, %s71
      %s73 = sphi 0, %s71
      %s74 = sphi 0, %s73
      %s88 = sphi 0, %s74
      %s92 = sphi 0, %s92
      %s94 = sphi 0, %s92
      %s95 = sphi 0, %s94
      %s109 = sphi 0, %s95
      %s113 = sphi 0, %s113
      %s115 = sphi 0, %s113
      %s116 = sphi 0, %s115
      %s130 = sphi 0, %s116
      %s134 = sphi 0, %s134
      %s136 = sphi 0, %s134
      %s137 = sphi 0, %s136
      %s151 = sphi 0, %s137
      %s155 = sphi 0, %s155
      %s157 = sphi 0, %s155
      %s158 = sphi 0, %s157
      %s172 = sphi 0, %s158
      %s178 = sphi 0, %s180
      %s181 = sphi 0, %s178
      %s182 = sphi 0, %s181
      %s198 = sphi 0, %s182
    $region4: #{tpu_custom_call.1} parent=1 // loop_header_branch
      %19 = sbr.rel (%p17) target = $region8
    $region5: #{tpu_custom_call.1} parent=1 // loop_body
      %s21 = ssub.s32 %s16, 1
      %s22 = ssub.s32 %s16, 2
      %s23 = sadd.s32 %s16, 1
      %s24 = ssub.s32 %s16, %s23
      %p25 = scmp.eq.s32.totalorder %s24, 0
      %s27 = sadd.s32 %s26, 1
      %s28 = scalar_select %p25, %s26, %s27
      %p31 = pneg %p25
      %p32 = scmp.eq.s32.totalorder %s16, 1
      %p33 = por %p31, %p32
      %p34 = scmp.ne.s32.totalorder %s26, %s29
      %p35 = scmp.eq.s32.totalorder %s16, 0
      %p36 = por %p34, %p35
      %p37 = scmp.ne.s32.totalorder %s26, %s29
      %p38 = scmp.eq.s32.totalorder %s21, 1
      %p39 = por %p37, %p38
      %p40 = scmp.ne.s32.totalorder %s29, %s30
      %p41 = scmp.eq.s32.totalorder %s21, 0
      %p42 = por %p40, %p41
      %p43 = scmp.ne.s32.totalorder %s29, %s30
      %p44 = scmp.eq.s32.totalorder %s22, 1
      %p45 = por %p43, %p44
      %p47 = scmp.ne.s32.totalorder %s30, %s46
      %p48 = scmp.eq.s32.totalorder %s22, 0
      %p49 = por %p47, %p48
      %s51 = sadd.s32 %s50, 1
      %p54 = scmp.eq.s32.totalorder %s16, 1
      %p55 = scmp.ne.s32.totalorder %s50, %s52
      %p56 = scmp.eq.s32.totalorder %s16, 0
      %p57 = por %p55, %p56
      %p58 = scmp.ne.s32.totalorder %s50, %s52
      %p59 = scmp.eq.s32.totalorder %s21, 1
      %p60 = por %p58, %p59
      %p61 = scmp.ne.s32.totalorder %s52, %s53
      %p62 = scmp.eq.s32.totalorder %s21, 0
      %p63 = por %p61, %p62
      %p64 = scmp.ne.s32.totalorder %s52, %s53
      %p65 = scmp.eq.s32.totalorder %s22, 1
      %p66 = por %p64, %p65
      %p68 = scmp.ne.s32.totalorder %s53, %s67
      %p69 = scmp.eq.s32.totalorder %s22, 0
      %p70 = por %p68, %p69
      %s72 = sadd.s32 %s71, 1
      %p75 = scmp.eq.s32.totalorder %s16, 1
      %p76 = scmp.ne.s32.totalorder %s71, %s73
      %p77 = scmp.eq.s32.totalorder %s16, 0
      %p78 = por %p76, %p77
      %p79 = scmp.ne.s32.totalorder %s71, %s73
      %p80 = scmp.eq.s32.totalorder %s21, 1
      %p81 = por %p79, %p80
      %p82 = scmp.ne.s32.totalorder %s73, %s74
      %p83 = scmp.eq.s32.totalorder %s21, 0
      %p84 = por %p82, %p83
      %p85 = scmp.ne.s32.totalorder %s73, %s74
      %p86 = scmp.eq.s32.totalorder %s22, 1
      %p87 = por %p85, %p86
      %p89 = scmp.ne.s32.totalorder %s74, %s88
      %p90 = scmp.eq.s32.totalorder %s22, 0
      %p91 = por %p89, %p90
      %s93 = sadd.s32 %s92, 1
      %p96 = scmp.eq.s32.totalorder %s16, 1
      %p97 = scmp.ne.s32.totalorder %s92, %s94
      %p98 = scmp.eq.s32.totalorder %s16, 0
      %p99 = por %p97, %p98
      %p100 = scmp.ne.s32.totalorder %s92, %s94
      %p101 = scmp.eq.s32.totalorder %s21, 1
      %p102 = por %p100, %p101
      %p103 = scmp.ne.s32.totalorder %s94, %s95
      %p104 = scmp.eq.s32.totalorder %s21, 0
      %p105 = por %p103, %p104
      %p106 = scmp.ne.s32.totalorder %s94, %s95
      %p107 = scmp.eq.s32.totalorder %s22, 1
      %p108 = por %p106, %p107
      %p110 = scmp.ne.s32.totalorder %s95, %s109
      %p111 = scmp.eq.s32.totalorder %s22, 0
      %p112 = por %p110, %p111
      %s114 = sadd.s32 %s113, 1
      %p117 = scmp.eq.s32.totalorder %s16, 1
      %p118 = scmp.ne.s32.totalorder %s113, %s115
      %p119 = scmp.eq.s32.totalorder %s16, 0
      %p120 = por %p118, %p119
      %p121 = scmp.ne.s32.totalorder %s113, %s115
      %p122 = scmp.eq.s32.totalorder %s21, 1
      %p123 = por %p121, %p122
      %p124 = scmp.ne.s32.totalorder %s115, %s116
      %p125 = scmp.eq.s32.totalorder %s21, 0
      %p126 = por %p124, %p125
      %p127 = scmp.ne.s32.totalorder %s115, %s116
      %p128 = scmp.eq.s32.totalorder %s22, 1
      %p129 = por %p127, %p128
      %p131 = scmp.ne.s32.totalorder %s116, %s130
      %p132 = scmp.eq.s32.totalorder %s22, 0
      %p133 = por %p131, %p132
      %s135 = sadd.s32 %s134, 1
      %p138 = scmp.eq.s32.totalorder %s16, 1
      %p139 = scmp.ne.s32.totalorder %s134, %s136
      %p140 = scmp.eq.s32.totalorder %s16, 0
      %p141 = por %p139, %p140
      %p142 = scmp.ne.s32.totalorder %s134, %s136
      %p143 = scmp.eq.s32.totalorder %s21, 1
      %p144 = por %p142, %p143
      %p145 = scmp.ne.s32.totalorder %s136, %s137
      %p146 = scmp.eq.s32.totalorder %s21, 0
      %p147 = por %p145, %p146
      %p148 = scmp.ne.s32.totalorder %s136, %s137
      %p149 = scmp.eq.s32.totalorder %s22, 1
      %p150 = por %p148, %p149
      %p152 = scmp.ne.s32.totalorder %s137, %s151
      %p153 = scmp.eq.s32.totalorder %s22, 0
      %p154 = por %p152, %p153
      %s156 = sadd.s32 %s155, 1
      %p159 = scmp.eq.s32.totalorder %s16, 1
      %p160 = scmp.ne.s32.totalorder %s155, %s157
      %p161 = scmp.eq.s32.totalorder %s16, 0
      %p162 = por %p160, %p161
      %p163 = scmp.ne.s32.totalorder %s155, %s157
      %p164 = scmp.eq.s32.totalorder %s21, 1
      %p165 = por %p163, %p164
      %p166 = scmp.ne.s32.totalorder %s157, %s158
      %p167 = scmp.eq.s32.totalorder %s21, 0
      %p168 = por %p166, %p167
      %p169 = scmp.ne.s32.totalorder %s157, %s158
      %p170 = scmp.eq.s32.totalorder %s22, 1
      %p171 = por %p169, %p170
      %p173 = scmp.ne.s32.totalorder %s158, %s172
      %p174 = scmp.eq.s32.totalorder %s22, 0
      %p175 = por %p173, %p174
      %s176 = ssub.s32 %s16, %s23
      %p177 = scmp.eq.s32.totalorder %s176, 0
      %s179 = sadd.s32 %s178, 1
      %s180 = scalar_select %p177, %s178, %s179
      %p183 = pneg %p177
      %p184 = scmp.eq.s32.totalorder %s16, 1
      %p185 = por %p183, %p184
      %p186 = scmp.ne.s32.totalorder %s178, %s181
      %p187 = scmp.eq.s32.totalorder %s16, 0
      %p188 = por %p186, %p187
      %p189 = scmp.ne.s32.totalorder %s178, %s181
      %p190 = scmp.eq.s32.totalorder %s21, 1
      %p191 = por %p189, %p190
      %p192 = scmp.ne.s32.totalorder %s181, %s182
      %p193 = scmp.eq.s32.totalorder %s21, 0
      %p194 = por %p192, %p193
      %p195 = scmp.ne.s32.totalorder %s181, %s182
      %p196 = scmp.eq.s32.totalorder %s22, 1
      %p197 = por %p195, %p196
      %p199 = scmp.ne.s32.totalorder %s182, %s198
      %p200 = scmp.eq.s32.totalorder %s22, 0
      %p201 = por %p199, %p200
      %p202 = scmp.le.s32.totalorder 1, %s16
      %p203 = scmp.lt.s32.totalorder %s16, 3
      %p204 = pnand %p202, %p203
      %p205 = pneg %p204
      // Predicated region
      $region9: #{tpu_custom_call.1} parent=5 // pred_check
        _
      $region10: #{tpu_custom_call.1} parent=5 // pred_check_branch
        %207 = sbr.rel (%p204) target = $region12
      $region11: #{tpu_custom_call.1} parent=5 // pred_region
        %s208 = ssub.s32 %s16, 1
        // Predicated region
        $region13: #{tpu_custom_call.1} parent=11 // pred_check
          %p209 = pneg %p63
        $region14: #{tpu_custom_call.1} parent=11 // pred_check_branch
          %211 = sbr.rel (%p209) target = $region16
        $region15: #{tpu_custom_call.1} parent=11 // pred_region
          _
        $region16: #{tpu_custom_call.1} parent=11 // pred_fallthru
          _
        // Predicated region
        $region17: #{tpu_custom_call.1} parent=11 // pred_check
          %p212 = pneg %p84
        $region18: #{tpu_custom_call.1} parent=11 // pred_check_branch
          %214 = sbr.rel (%p212) target = $region20
        $region19: #{tpu_custom_call.1} parent=11 // pred_region
          _
        $region20: #{tpu_custom_call.1} parent=11 // pred_fallthru
          _
        // Predicated region
        $region21: #{tpu_custom_call.1} parent=11 // pred_check
          %p215 = pneg %p105
        $region22: #{tpu_custom_call.1} parent=11 // pred_check_branch
          %217 = sbr.rel (%p215) target = $region24
        $region23: #{tpu_custom_call.1} parent=11 // pred_region
          _
        $region24: #{tpu_custom_call.1} parent=11 // pred_fallthru
          _
        // Predicated region
        $region25: #{tpu_custom_call.1} parent=11 // pred_check
          %p218 = pneg %p126
        $region26: #{tpu_custom_call.1} parent=11 // pred_check_branch
          %220 = sbr.rel (%p218) target = $region28
        $region27: #{tpu_custom_call.1} parent=11 // pred_region
          _
        $region28: #{tpu_custom_call.1} parent=11 // pred_fallthru
          _
        // Predicated region
        $region29: #{tpu_custom_call.1} parent=11 // pred_check
          %p221 = pneg %p147
        $region30: #{tpu_custom_call.1} parent=11 // pred_check_branch
          %223 = sbr.rel (%p221) target = $region32
        $region31: #{tpu_custom_call.1} parent=11 // pred_region
          _
        $region32: #{tpu_custom_call.1} parent=11 // pred_fallthru
          _
        // Predicated region
        $region33: #{tpu_custom_call.1} parent=11 // pred_check
          %p224 = pneg %p168
        $region34: #{tpu_custom_call.1} parent=11 // pred_check_branch
          %226 = sbr.rel (%p224) target = $region36
        $region35: #{tpu_custom_call.1} parent=11 // pred_region
          _
        $region36: #{tpu_custom_call.1} parent=11 // pred_fallthru
          _
      $region12: #{tpu_custom_call.1} parent=5 // pred_fallthru
        _
      %p227 = scmp.lt.s32.totalorder %s16, 2
      // Predicated region
      $region37: #{tpu_custom_call.1} parent=5 // pred_check
        %p228 = pneg %p227
      $region38: #{tpu_custom_call.1} parent=5 // pred_check_branch
        %230 = sbr.rel (%p228) target = $region40
      $region39: #{tpu_custom_call.1} parent=5 // pred_region
        // Predicated region
        $region41: #{tpu_custom_call.1} parent=39 // pred_check
          %p231 = pneg %p36
        $region42: #{tpu_custom_call.1} parent=39 // pred_check_branch
          %233 = sbr.rel (%p231) target = $region44
        $region43: #{tpu_custom_call.1} parent=39 // pred_region
          %p234 = scmp.lt.s32.totalorder %s16, 1
          %s235 = scalar_select %p234, %s16, 1
          %s236 = smul.addr %s235, 4
          %s237 = scalar_lea.vmem %s0, %s236
        $region44: #{tpu_custom_call.1} parent=39 // pred_fallthru
          _
      $region40: #{tpu_custom_call.1} parent=5 // pred_fallthru
        _
      %p238 = scmp.le.s32.totalorder 1, %s16
      %p239 = scmp.lt.s32.totalorder %s16, 3
      %p240 = pnand %p238, %p239
      %p241 = pneg %p240
      // Predicated region
      $region45: #{tpu_custom_call.1} parent=5 // pred_check
        _
      $region46: #{tpu_custom_call.1} parent=5 // pred_check_branch
        %243 = sbr.rel (%p240) target = $region48
      $region47: #{tpu_custom_call.1} parent=5 // pred_region
        %s244 = ssub.s32 %s16, 1
        %p245 = scmp.lt.s32.totalorder %s21, 1
        %s246 = scalar_select %p245, %s21, 1
        %s247 = smul.addr %s246, 4
        %s248 = scalar_lea.vmem %s0, %s247
        %p249 = pneg %p42
        %p250 = pneg %p39
        %p251 = pneg %p63
        %p252 = pneg %p60
        %p253 = pneg %p84
        %p254 = pneg %p81
        %p255 = pneg %p105
        %p256 = pneg %p102
        %p257 = pneg %p126
        %p258 = pneg %p123
        %p259 = pneg %p147
        %p260 = pneg %p144
        %p261 = pneg %p168
        %p262 = pneg %p165
        %p263 = pneg %p194
        %p264 = pneg %p191
        %s265 = sand.u32 %s181, 1
        %s266 = scalar_lea.sflag [#allocation3], %s265
        %s267 = sand.u32 %s181, 1
        %s268 = smul.addr %s267, 8
        %s269 = scalar_lea.vmem [#allocation2], %s268
        %p270 = scmp.lt.s32.totalorder %s21, 1
        %s271 = scalar_select %p270, %s21, 1
        %s272 = smul.addr %s271, 4
        %s273 = scalar_lea.vmem %s0, %s272
        %v274 = vlaneseq
        %v275 = vand.u32 %v274, 127
        %vm276 = vcmp.ge.s32.totalorder %v275, 2
        %vm277 = vcmp.ge.s32.totalorder %v275, 4
        %v278 = vld [vmem:[%s1] sm:$0xff]
        %s279 = scalar_lea.vmem %s1, 8
        %v280 = vld [vmem:[%s279] sm:$0xff]
        %s281 = scalar_lea.vmem %s1, 16
        %v282 = vld [vmem:[%s281] sm:$0xff]
        %v283 = vld [vmem:[%s3] sm:$0xff]
        %s284 = scalar_lea.vmem %s3, 8
        %v285 = vld [vmem:[%s284] sm:$0xff]
        %s286 = scalar_lea.vmem %s3, 16
        %v287 = vld [vmem:[%s286] sm:$0xff]
        %v288 = vld [vmem:[%s2] sm:$0xff]
        %v289 = vld [vmem:[%s4] sm:$0xff]
        %v290 = vld [vmem:[%s5] sm:$0xff]
        %v291 = vld [vmem:[%s6] sm:$0xff]
        %v292 = vld [vmem:[%s273] sm:$0xf]
        %vm293 = vcmask 1047680
        %294 = vrot.lane.b32.xlu0 %v292, 16
        %v295 = vpop.permute.xlu0 %294
        %v296 = vsel %vm293, %v295, %v292
        %297 = vrot.lane.b32.xlu0 %v296, 16
        %v298 = vpop.permute.xlu0 %297
        %v299 = vsel %vm293, %v298, %v292
        %v300 = vsel %vm277, 1, 0
        %vm301 = vcmp.eq.s32.totalorder %v300, 1
        %303 = vrot.lane.b32.xlu0 %v299, 116
        %v304 = vpop.permute.xlu0 %303
        %v306 = vsel %vm301, %v304, 0.0
        %v307 = vsel %vm276, 1, 0
        %vm308 = vcmp.eq.s32.totalorder %v307, 1
        %309 = vrot.lane.b32.xlu0 %v299, 114
        %v310 = vpop.permute.xlu0 %309
        %v312 = vsel %vm308, %v310, 0.0
        %vm313 = vcmask 31744
        %v315 = vsel %vm313, %v280, 0
        %vm317 = vcmask 1043456
        %v319 = vsel %vm317, %v312, 0
        %321 = vmatprep.subr.mxu0 0.0
        %322 = vmatpush1.msra.mxu0 %v319
        %323 = vmatprep.subr.mxu0 0.0
        %324 = vmatpush1.msra.mxu0 0.0
        %325 = vmatprep.subr.mxu0 0.0
        %326 = vmatpush1.msra.mxu0 0.0
        %327 = vmatprep.subr.mxu0 0.0
        %328 = vmatpush1.msra.mxu0 0.0
        %329 = vmatprep.subr.mxu0 0.0
        %330 = vmatpush1.msra.mxu0 0.0
        %331 = vmatprep.subr.mxu0 0.0
        %332 = vmatpush1.msra.mxu0 0.0
        %333 = vmatprep.subr.mxu0 0.0
        %334 = vmatpush1.msra.mxu0 0.0
        %335 = vmatprep.subr.mxu0 0.0
        %336 = vmatpush1.msra.mxu0 0.0
        %337 = vmatprep.subr.mxu0 0.0
        %338 = vmatpush1.msra.mxu0 0.0
        %339 = vmatprep.subr.mxu0 0.0
        %340 = vmatpush1.msra.mxu0 0.0
        %341 = vmatprep.subr.mxu0 0.0
        %342 = vmatpush1.msra.mxu0 0.0
        %343 = vmatprep.subr.mxu0 0.0
        %344 = vmatpush1.msra.mxu0 0.0
        %345 = vmatprep.subr.mxu0 0.0
        %346 = vmatpush1.msra.mxu0 0.0
        %347 = vmatprep.subr.mxu0 0.0
        %348 = vmatpush1.msra.mxu0 0.0
        %349 = vmatprep.subr.mxu0 0.0
        %350 = vmatpush1.msra.mxu0 0.0
        %351 = vmatprep.subr.mxu0 0.0
        %352 = vmatpush1.msra.mxu0 0.0
        %353 = vmatprep.subr.mxu0 0.0
        %354 = vmatpush1.msra.mxu0 0.0
        %355 = vmatprep.subr.mxu0 0.0
        %356 = vmatpush1.msra.mxu0 0.0
        %357 = vmatprep.subr.mxu0 0.0
        %358 = vmatpush1.msra.mxu0 0.0
        %359 = vmatprep.subr.mxu0 0.0
        %360 = vmatpush1.msra.mxu0 0.0
        %361 = vmatprep.subr.mxu0 0.0
        %362 = vmatpush1.msra.mxu0 0.0
        %363 = vmatprep.subr.mxu0 0.0
        %364 = vmatpush1.msra.mxu0 0.0
        %365 = vmatprep.subr.mxu0 0.0
        %366 = vmatpush1.msra.mxu0 0.0
        %367 = vmatprep.subr.mxu0 0.0
        %368 = vmatpush1.msra.mxu0 0.0
        %369 = vmatprep.subr.mxu0 0.0
        %370 = vmatpush1.msra.mxu0 0.0
        %371 = vmatprep.subr.mxu0 0.0
        %372 = vmatpush1.msra.mxu0 0.0
        %373 = vmatprep.subr.mxu0 0.0
        %374 = vmatpush1.msra.mxu0 0.0
        %375 = vmatprep.subr.mxu0 0.0
        %376 = vmatpush1.msra.mxu0 0.0
        %377 = vmatprep.subr.mxu0 0.0
        %378 = vmatpush1.msra.mxu0 0.0
        %379 = vmatprep.subr.mxu0 0.0
        %380 = vmatpush1.msra.mxu0 0.0
        %381 = vmatprep.subr.mxu0 0.0
        %382 = vmatpush1.msra.mxu0 0.0
        %383 = vmatprep.subr.mxu0 0.0
        %384 = vmatpush1.msra.mxu0 0.0
        %385 = vmatprep.mubr.f32.mxu0 0.0
        %386 = vmatmul.mubr.f32.gmra.mrb[0].mxu0 %v315
        %v387 = vpop.f32.mrb[0].mxu0
        %v388 = vadd.f32 0.0, %v387
        %v389 = vpop.f32.mrb[0].mxu0
        %390 = vdwg.mxu0
        %v392 = vsel %vm313, %v278, 0
        %v395 = vsel %vm317, %v306, 0
        %397 = vmatprep.subr.mxu0 0.0
        %398 = vmatpush1.msra.mxu0 %v395
        %399 = vmatprep.subr.mxu0 0.0
        %400 = vmatpush1.msra.mxu0 0.0
        %401 = vmatprep.subr.mxu0 0.0
        %402 = vmatpush1.msra.mxu0 0.0
        %403 = vmatprep.subr.mxu0 0.0
        %404 = vmatpush1.msra.mxu0 0.0
        %405 = vmatprep.subr.mxu0 0.0
        %406 = vmatpush1.msra.mxu0 0.0
        %407 = vmatprep.subr.mxu0 0.0
        %408 = vmatpush1.msra.mxu0 0.0
        %409 = vmatprep.subr.mxu0 0.0
        %410 = vmatpush1.msra.mxu0 0.0
        %411 = vmatprep.subr.mxu0 0.0
        %412 = vmatpush1.msra.mxu0 0.0
        %413 = vmatprep.subr.mxu0 0.0
        %414 = vmatpush1.msra.mxu0 0.0
        %415 = vmatprep.subr.mxu0 0.0
        %416 = vmatpush1.msra.mxu0 0.0
        %417 = vmatprep.subr.mxu0 0.0
        %418 = vmatpush1.msra.mxu0 0.0
        %419 = vmatprep.subr.mxu0 0.0
        %420 = vmatpush1.msra.mxu0 0.0
        %421 = vmatprep.subr.mxu0 0.0
        %422 = vmatpush1.msra.mxu0 0.0
        %423 = vmatprep.subr.mxu0 0.0
        %424 = vmatpush1.msra.mxu0 0.0
        %425 = vmatprep.subr.mxu0 0.0
        %426 = vmatpush1.msra.mxu0 0.0
        %427 = vmatprep.subr.mxu0 0.0
        %428 = vmatpush1.msra.mxu0 0.0
        %429 = vmatprep.subr.mxu0 0.0
        %430 = vmatpush1.msra.mxu0 0.0
        %431 = vmatprep.subr.mxu0 0.0
        %432 = vmatpush1.msra.mxu0 0.0
        %433 = vmatprep.subr.mxu0 0.0
        %434 = vmatpush1.msra.mxu0 0.0
        %435 = vmatprep.subr.mxu0 0.0
        %436 = vmatpush1.msra.mxu0 0.0
        %437 = vmatprep.subr.mxu0 0.0
        %438 = vmatpush1.msra.mxu0 0.0
        %439 = vmatprep.subr.mxu0 0.0
        %440 = vmatpush1.msra.mxu0 0.0
        %441 = vmatprep.subr.mxu0 0.0
        %442 = vmatpush1.msra.mxu0 0.0
        %443 = vmatprep.subr.mxu0 0.0
        %444 = vmatpush1.msra.mxu0 0.0
        %445 = vmatprep.subr.mxu0 0.0
        %446 = vmatpush1.msra.mxu0 0.0
        %447 = vmatprep.subr.mxu0 0.0
        %448 = vmatpush1.msra.mxu0 0.0
        %449 = vmatprep.subr.mxu0 0.0
        %450 = vmatpush1.msra.mxu0 0.0
        %451 = vmatprep.subr.mxu0 0.0
        %452 = vmatpush1.msra.mxu0 0.0
        %453 = vmatprep.subr.mxu0 0.0
        %454 = vmatpush1.msra.mxu0 0.0
        %455 = vmatprep.subr.mxu0 0.0
        %456 = vmatpush1.msra.mxu0 0.0
        %457 = vmatprep.subr.mxu0 0.0
        %458 = vmatpush1.msra.mxu0 0.0
        %459 = vmatprep.subr.mxu0 0.0
        %460 = vmatpush1.msra.mxu0 0.0
        %461 = vmatprep.mubr.f32.mxu0 0.0
        %462 = vmatmul.mubr.f32.gmra.mrb[0].mxu0 %v392
        %v463 = vpop.f32.mrb[0].mxu0
        %v464 = vadd.f32 %v388, %v463
        %v465 = vpop.f32.mrb[0].mxu0
        %466 = vdwg.mxu0
        %v468 = vsel %vm313, %v282, 0
        %v471 = vsel %vm317, %v292, 0
        %473 = vmatprep.subr.mxu0 0.0
        %474 = vmatpush1.msra.mxu0 %v471
        %475 = vmatprep.subr.mxu0 0.0
        %476 = vmatpush1.msra.mxu0 0.0
        %477 = vmatprep.subr.mxu0 0.0
        %478 = vmatpush1.msra.mxu0 0.0
        %479 = vmatprep.subr.mxu0 0.0
        %480 = vmatpush1.msra.mxu0 0.0
        %481 = vmatprep.subr.mxu0 0.0
        %482 = vmatpush1.msra.mxu0 0.0
        %483 = vmatprep.subr.mxu0 0.0
        %484 = vmatpush1.msra.mxu0 0.0
        %485 = vmatprep.subr.mxu0 0.0
        %486 = vmatpush1.msra.mxu0 0.0
        %487 = vmatprep.subr.mxu0 0.0
        %488 = vmatpush1.msra.mxu0 0.0
        %489 = vmatprep.subr.mxu0 0.0
        %490 = vmatpush1.msra.mxu0 0.0
        %491 = vmatprep.subr.mxu0 0.0
        %492 = vmatpush1.msra.mxu0 0.0
        %493 = vmatprep.subr.mxu0 0.0
        %494 = vmatpush1.msra.mxu0 0.0
        %495 = vmatprep.subr.mxu0 0.0
        %496 = vmatpush1.msra.mxu0 0.0
        %497 = vmatprep.subr.mxu0 0.0
        %498 = vmatpush1.msra.mxu0 0.0
        %499 = vmatprep.subr.mxu0 0.0
        %500 = vmatpush1.msra.mxu0 0.0
        %501 = vmatprep.subr.mxu0 0.0
        %502 = vmatpush1.msra.mxu0 0.0
        %503 = vmatprep.subr.mxu0 0.0
        %504 = vmatpush1.msra.mxu0 0.0
        %505 = vmatprep.subr.mxu0 0.0
        %506 = vmatpush1.msra.mxu0 0.0
        %507 = vmatprep.subr.mxu0 0.0
        %508 = vmatpush1.msra.mxu0 0.0
        %509 = vmatprep.subr.mxu0 0.0
        %510 = vmatpush1.msra.mxu0 0.0
        %511 = vmatprep.subr.mxu0 0.0
        %512 = vmatpush1.msra.mxu0 0.0
        %513 = vmatprep.subr.mxu0 0.0
        %514 = vmatpush1.msra.mxu0 0.0
        %515 = vmatprep.subr.mxu0 0.0
        %516 = vmatpush1.msra.mxu0 0.0
        %517 = vmatprep.subr.mxu0 0.0
        %518 = vmatpush1.msra.mxu0 0.0
        %519 = vmatprep.subr.mxu0 0.0
        %520 = vmatpush1.msra.mxu0 0.0
        %521 = vmatprep.subr.mxu0 0.0
        %522 = vmatpush1.msra.mxu0 0.0
        %523 = vmatprep.subr.mxu0 0.0
        %524 = vmatpush1.msra.mxu0 0.0
        %525 = vmatprep.subr.mxu0 0.0
        %526 = vmatpush1.msra.mxu0 0.0
        %527 = vmatprep.subr.mxu0 0.0
        %528 = vmatpush1.msra.mxu0 0.0
        %529 = vmatprep.subr.mxu0 0.0
        %530 = vmatpush1.msra.mxu0 0.0
        %531 = vmatprep.subr.mxu0 0.0
        %532 = vmatpush1.msra.mxu0 0.0
        %533 = vmatprep.subr.mxu0 0.0
        %534 = vmatpush1.msra.mxu0 0.0
        %535 = vmatprep.subr.mxu0 0.0
        %536 = vmatpush1.msra.mxu0 0.0
        %537 = vmatprep.mubr.f32.mxu0 0.0
        %538 = vmatmul.mubr.f32.gmra.mrb[0].mxu0 %v468
        %v539 = vpop.f32.mrb[0].mxu0
        %v540 = vadd.f32 0.0, %v539
        %v541 = vpop.f32.mrb[0].mxu0
        %542 = vdwg.mxu0
        %v543 = vadd.f32 %v464, %v540
        %545 = vset.pattern.permute.xlu0 0
        %546 = vperm.xlu0 %545, %v288
        %v547 = vpop.permute.xlu0 %546
        %v549 = vadd.f32 %v543, %v547
        %v550 = vmax.f32 %v549, 0.0
        %551 = vrot.lane.b32.xlu0 %v550, 16
        %v552 = vpop.permute.xlu0 %551
        %v553 = vsel %vm293, %v552, %v550
        %554 = vrot.lane.b32.xlu0 %v553, 16
        %v555 = vpop.permute.xlu0 %554
        %v556 = vsel %vm293, %v555, %v550
        %558 = vrot.lane.b32.xlu0 %v556, 116
        %v559 = vpop.permute.xlu0 %558
        %v561 = vsel %vm301, %v559, 0.0
        %562 = vrot.lane.b32.xlu0 %v556, 114
        %v563 = vpop.permute.xlu0 %562
        %v565 = vsel %vm308, %v563, 0.0
        %vm566 = vcmask 64512
        %v568 = vsel %vm566, %v285, 0
        %570 = vmatprep.subr.mxu0 0.0
        %571 = vmatpush1.msra.mxu0 %v565
        %572 = vmatprep.subr.mxu0 0.0
        %573 = vmatpush1.msra.mxu0 0.0
        %574 = vmatprep.subr.mxu0 0.0
        %575 = vmatpush1.msra.mxu0 0.0
        %576 = vmatprep.subr.mxu0 0.0
        %577 = vmatpush1.msra.mxu0 0.0
        %578 = vmatprep.subr.mxu0 0.0
        %579 = vmatpush1.msra.mxu0 0.0
        %580 = vmatprep.subr.mxu0 0.0
        %581 = vmatpush1.msra.mxu0 0.0
        %582 = vmatprep.subr.mxu0 0.0
        %583 = vmatpush1.msra.mxu0 0.0
        %584 = vmatprep.subr.mxu0 0.0
        %585 = vmatpush1.msra.mxu0 0.0
        %586 = vmatprep.subr.mxu0 0.0
        %587 = vmatpush1.msra.mxu0 0.0
        %588 = vmatprep.subr.mxu0 0.0
        %589 = vmatpush1.msra.mxu0 0.0
        %590 = vmatprep.subr.mxu0 0.0
        %591 = vmatpush1.msra.mxu0 0.0
        %592 = vmatprep.subr.mxu0 0.0
        %593 = vmatpush1.msra.mxu0 0.0
        %594 = vmatprep.subr.mxu0 0.0
        %595 = vmatpush1.msra.mxu0 0.0
        %596 = vmatprep.subr.mxu0 0.0
        %597 = vmatpush1.msra.mxu0 0.0
        %598 = vmatprep.subr.mxu0 0.0
        %599 = vmatpush1.msra.mxu0 0.0
        %600 = vmatprep.subr.mxu0 0.0
        %601 = vmatpush1.msra.mxu0 0.0
        %602 = vmatprep.subr.mxu0 0.0
        %603 = vmatpush1.msra.mxu0 0.0
        %604 = vmatprep.subr.mxu0 0.0
        %605 = vmatpush1.msra.mxu0 0.0
        %606 = vmatprep.subr.mxu0 0.0
        %607 = vmatpush1.msra.mxu0 0.0
        %608 = vmatprep.subr.mxu0 0.0
        %609 = vmatpush1.msra.mxu0 0.0
        %610 = vmatprep.subr.mxu0 0.0
        %611 = vmatpush1.msra.mxu0 0.0
        %612 = vmatprep.subr.mxu0 0.0
        %613 = vmatpush1.msra.mxu0 0.0
        %614 = vmatprep.subr.mxu0 0.0
        %615 = vmatpush1.msra.mxu0 0.0
        %616 = vmatprep.subr.mxu0 0.0
        %617 = vmatpush1.msra.mxu0 0.0
        %618 = vmatprep.subr.mxu0 0.0
        %619 = vmatpush1.msra.mxu0 0.0
        %620 = vmatprep.subr.mxu0 0.0
        %621 = vmatpush1.msra.mxu0 0.0
        %622 = vmatprep.subr.mxu0 0.0
        %623 = vmatpush1.msra.mxu0 0.0
        %624 = vmatprep.subr.mxu0 0.0
        %625 = vmatpush1.msra.mxu0 0.0
        %626 = vmatprep.subr.mxu0 0.0
        %627 = vmatpush1.msra.mxu0 0.0
        %628 = vmatprep.subr.mxu0 0.0
        %629 = vmatpush1.msra.mxu0 0.0
        %630 = vmatprep.subr.mxu0 0.0
        %631 = vmatpush1.msra.mxu0 0.0
        %632 = vmatprep.subr.mxu0 0.0
        %633 = vmatpush1.msra.mxu0 0.0
        %634 = vmatprep.mubr.f32.mxu0 0.0
        %635 = vmatmul.mubr.f32.gmra.mrb[0].mxu0 %v568
        %v636 = vpop.f32.mrb[0].mxu0
        %v637 = vadd.f32 0.0, %v636
        %v638 = vpop.f32.mrb[0].mxu0
        %639 = vdwg.mxu0
        %v641 = vsel %vm566, %v283, 0
        %643 = vmatprep.subr.mxu0 0.0
        %644 = vmatpush1.msra.mxu0 %v561
        %645 = vmatprep.subr.mxu0 0.0
        %646 = vmatpush1.msra.mxu0 0.0
        %647 = vmatprep.subr.mxu0 0.0
        %648 = vmatpush1.msra.mxu0 0.0
        %649 = vmatprep.subr.mxu0 0.0
        %650 = vmatpush1.msra.mxu0 0.0
        %651 = vmatprep.subr.mxu0 0.0
        %652 = vmatpush1.msra.mxu0 0.0
        %653 = vmatprep.subr.mxu0 0.0
        %654 = vmatpush1.msra.mxu0 0.0
        %655 = vmatprep.subr.mxu0 0.0
        %656 = vmatpush1.msra.mxu0 0.0
        %657 = vmatprep.subr.mxu0 0.0
        %658 = vmatpush1.msra.mxu0 0.0
        %659 = vmatprep.subr.mxu0 0.0
        %660 = vmatpush1.msra.mxu0 0.0
        %661 = vmatprep.subr.mxu0 0.0
        %662 = vmatpush1.msra.mxu0 0.0
        %663 = vmatprep.subr.mxu0 0.0
        %664 = vmatpush1.msra.mxu0 0.0
        %665 = vmatprep.subr.mxu0 0.0
        %666 = vmatpush1.msra.mxu0 0.0
        %667 = vmatprep.subr.mxu0 0.0
        %668 = vmatpush1.msra.mxu0 0.0
        %669 = vmatprep.subr.mxu0 0.0
        %670 = vmatpush1.msra.mxu0 0.0
        %671 = vmatprep.subr.mxu0 0.0
        %672 = vmatpush1.msra.mxu0 0.0
        %673 = vmatprep.subr.mxu0 0.0
        %674 = vmatpush1.msra.mxu0 0.0
        %675 = vmatprep.subr.mxu0 0.0
        %676 = vmatpush1.msra.mxu0 0.0
        %677 = vmatprep.subr.mxu0 0.0
        %678 = vmatpush1.msra.mxu0 0.0
        %679 = vmatprep.subr.mxu0 0.0
        %680 = vmatpush1.msra.mxu0 0.0
        %681 = vmatprep.subr.mxu0 0.0
        %682 = vmatpush1.msra.mxu0 0.0
        %683 = vmatprep.subr.mxu0 0.0
        %684 = vmatpush1.msra.mxu0 0.0
        %685 = vmatprep.subr.mxu0 0.0
        %686 = vmatpush1.msra.mxu0 0.0
        %687 = vmatprep.subr.mxu0 0.0
        %688 = vmatpush1.msra.mxu0 0.0
        %689 = vmatprep.subr.mxu0 0.0
        %690 = vmatpush1.msra.mxu0 0.0
        %691 = vmatprep.subr.mxu0 0.0
        %692 = vmatpush1.msra.mxu0 0.0
        %693 = vmatprep.subr.mxu0 0.0
        %694 = vmatpush1.msra.mxu0 0.0
        %695 = vmatprep.subr.mxu0 0.0
        %696 = vmatpush1.msra.mxu0 0.0
        %697 = vmatprep.subr.mxu0 0.0
        %698 = vmatpush1.msra.mxu0 0.0
        %699 = vmatprep.subr.mxu0 0.0
        %700 = vmatpush1.msra.mxu0 0.0
        %701 = vmatprep.subr.mxu0 0.0
        %702 = vmatpush1.msra.mxu0 0.0
        %703 = vmatprep.subr.mxu0 0.0
        %704 = vmatpush1.msra.mxu0 0.0
        %705 = vmatprep.subr.mxu0 0.0
        %706 = vmatpush1.msra.mxu0 0.0
        %707 = vmatprep.mubr.f32.mxu0 0.0
        %708 = vmatmul.mubr.f32.gmra.mrb[0].mxu0 %v641
        %v709 = vpop.f32.mrb[0].mxu0
        %v710 = vadd.f32 %v637, %v709
        %v711 = vpop.f32.mrb[0].mxu0
        %712 = vdwg.mxu0
        %v714 = vsel %vm566, %v287, 0
        %716 = vmatprep.subr.mxu0 0.0
        %717 = vmatpush1.msra.mxu0 %v550
        %718 = vmatprep.subr.mxu0 0.0
        %719 = vmatpush1.msra.mxu0 0.0
        %720 = vmatprep.subr.mxu0 0.0
        %721 = vmatpush1.msra.mxu0 0.0
        %722 = vmatprep.subr.mxu0 0.0
        %723 = vmatpush1.msra.mxu0 0.0
        %724 = vmatprep.subr.mxu0 0.0
        %725 = vmatpush1.msra.mxu0 0.0
        %726 = vmatprep.subr.mxu0 0.0
        %727 = vmatpush1.msra.mxu0 0.0
        %728 = vmatprep.subr.mxu0 0.0
        %729 = vmatpush1.msra.mxu0 0.0
        %730 = vmatprep.subr.mxu0 0.0
        %731 = vmatpush1.msra.mxu0 0.0
        %732 = vmatprep.subr.mxu0 0.0
        %733 = vmatpush1.msra.mxu0 0.0
        %734 = vmatprep.subr.mxu0 0.0
        %735 = vmatpush1.msra.mxu0 0.0
        %736 = vmatprep.subr.mxu0 0.0
        %737 = vmatpush1.msra.mxu0 0.0
        %738 = vmatprep.subr.mxu0 0.0
        %739 = vmatpush1.msra.mxu0 0.0
        %740 = vmatprep.subr.mxu0 0.0
        %741 = vmatpush1.msra.mxu0 0.0
        %742 = vmatprep.subr.mxu0 0.0
        %743 = vmatpush1.msra.mxu0 0.0
        %744 = vmatprep.subr.mxu0 0.0
        %745 = vmatpush1.msra.mxu0 0.0
        %746 = vmatprep.subr.mxu0 0.0
        %747 = vmatpush1.msra.mxu0 0.0
        %748 = vmatprep.subr.mxu0 0.0
        %749 = vmatpush1.msra.mxu0 0.0
        %750 = vmatprep.subr.mxu0 0.0
        %751 = vmatpush1.msra.mxu0 0.0
        %752 = vmatprep.subr.mxu0 0.0
        %753 = vmatpush1.msra.mxu0 0.0
        %754 = vmatprep.subr.mxu0 0.0
        %755 = vmatpush1.msra.mxu0 0.0
        %756 = vmatprep.subr.mxu0 0.0
        %757 = vmatpush1.msra.mxu0 0.0
        %758 = vmatprep.subr.mxu0 0.0
        %759 = vmatpush1.msra.mxu0 0.0
        %760 = vmatprep.subr.mxu0 0.0
        %761 = vmatpush1.msra.mxu0 0.0
        %762 = vmatprep.subr.mxu0 0.0
        %763 = vmatpush1.msra.mxu0 0.0
        %764 = vmatprep.subr.mxu0 0.0
        %765 = vmatpush1.msra.mxu0 0.0
        %766 = vmatprep.subr.mxu0 0.0
        %767 = vmatpush1.msra.mxu0 0.0
        %768 = vmatprep.subr.mxu0 0.0
        %769 = vmatpush1.msra.mxu0 0.0
        %770 = vmatprep.subr.mxu0 0.0
        %771 = vmatpush1.msra.mxu0 0.0
        %772 = vmatprep.subr.mxu0 0.0
        %773 = vmatpush1.msra.mxu0 0.0
        %774 = vmatprep.subr.mxu0 0.0
        %775 = vmatpush1.msra.mxu0 0.0
        %776 = vmatprep.subr.mxu0 0.0
        %777 = vmatpush1.msra.mxu0 0.0
        %778 = vmatprep.subr.mxu0 0.0
        %779 = vmatpush1.msra.mxu0 0.0
        %780 = vmatprep.mubr.f32.mxu0 0.0
        %781 = vmatmul.mubr.f32.gmra.mrb[0].mxu0 %v714
        %v782 = vpop.f32.mrb[0].mxu0
        %v783 = vadd.f32 0.0, %v782
        %v784 = vpop.f32.mrb[0].mxu0
        %785 = vdwg.mxu0
        %v786 = vadd.f32 %v710, %v783
        %788 = vset.pattern.permute.xlu0 0
        %789 = vperm.xlu0 %788, %v289
        %v790 = vpop.permute.xlu0 %789
        %v792 = vadd.f32 %v786, %v790
        %v793 = vmax.f32 %v792, 0.0
        %795 = vset.pattern.permute.xlu0 0
        %796 = vperm.xlu0 %795, %v291
        %v797 = vpop.permute.xlu0 %796
        %v800 = vsel %vm313, %v290, 0
        %802 = vmatprep.subr.mxu0 0.0
        %803 = vmatpush1.msra.mxu0 %v471
        %804 = vmatprep.subr.mxu0 0.0
        %805 = vmatpush1.msra.mxu0 0.0
        %806 = vmatprep.subr.mxu0 0.0
        %807 = vmatpush1.msra.mxu0 0.0
        %808 = vmatprep.subr.mxu0 0.0
        %809 = vmatpush1.msra.mxu0 0.0
        %810 = vmatprep.subr.mxu0 0.0
        %811 = vmatpush1.msra.mxu0 0.0
        %812 = vmatprep.subr.mxu0 0.0
        %813 = vmatpush1.msra.mxu0 0.0
        %814 = vmatprep.subr.mxu0 0.0
        %815 = vmatpush1.msra.mxu0 0.0
        %816 = vmatprep.subr.mxu0 0.0
        %817 = vmatpush1.msra.mxu0 0.0
        %818 = vmatprep.subr.mxu0 0.0
        %819 = vmatpush1.msra.mxu0 0.0
        %820 = vmatprep.subr.mxu0 0.0
        %821 = vmatpush1.msra.mxu0 0.0
        %822 = vmatprep.subr.mxu0 0.0
        %823 = vmatpush1.msra.mxu0 0.0
        %824 = vmatprep.subr.mxu0 0.0
        %825 = vmatpush1.msra.mxu0 0.0
        %826 = vmatprep.subr.mxu0 0.0
        %827 = vmatpush1.msra.mxu0 0.0
        %828 = vmatprep.subr.mxu0 0.0
        %829 = vmatpush1.msra.mxu0 0.0
        %830 = vmatprep.subr.mxu0 0.0
        %831 = vmatpush1.msra.mxu0 0.0
        %832 = vmatprep.subr.mxu0 0.0
        %833 = vmatpush1.msra.mxu0 0.0
        %834 = vmatprep.subr.mxu0 0.0
        %835 = vmatpush1.msra.mxu0 0.0
        %836 = vmatprep.subr.mxu0 0.0
        %837 = vmatpush1.msra.mxu0 0.0
        %838 = vmatprep.subr.mxu0 0.0
        %839 = vmatpush1.msra.mxu0 0.0
        %840 = vmatprep.subr.mxu0 0.0
        %841 = vmatpush1.msra.mxu0 0.0
        %842 = vmatprep.subr.mxu0 0.0
        %843 = vmatpush1.msra.mxu0 0.0
        %844 = vmatprep.subr.mxu0 0.0
        %845 = vmatpush1.msra.mxu0 0.0
        %846 = vmatprep.subr.mxu0 0.0
        %847 = vmatpush1.msra.mxu0 0.0
        %848 = vmatprep.subr.mxu0 0.0
        %849 = vmatpush1.msra.mxu0 0.0
        %850 = vmatprep.subr.mxu0 0.0
        %851 = vmatpush1.msra.mxu0 0.0
        %852 = vmatprep.subr.mxu0 0.0
        %853 = vmatpush1.msra.mxu0 0.0
        %854 = vmatprep.subr.mxu0 0.0
        %855 = vmatpush1.msra.mxu0 0.0
        %856 = vmatprep.subr.mxu0 0.0
        %857 = vmatpush1.msra.mxu0 0.0
        %858 = vmatprep.subr.mxu0 0.0
        %859 = vmatpush1.msra.mxu0 0.0
        %860 = vmatprep.subr.mxu0 0.0
        %861 = vmatpush1.msra.mxu0 0.0
        %862 = vmatprep.subr.mxu0 0.0
        %863 = vmatpush1.msra.mxu0 0.0
        %864 = vmatprep.subr.mxu0 0.0
        %865 = vmatpush1.msra.mxu0 0.0
        %866 = vmatprep.mubr.f32.mxu0 0.0
        %867 = vmatmul.mubr.f32.gmra.mrb[0].mxu0 %v800
        %v868 = vpop.f32.mrb[0].mxu0
        %v869 = vadd.f32 %v797, %v868
        %v870 = vpop.f32.mrb[0].mxu0
        %871 = vdwg.mxu0
        %v872 = vadd.f32 %v793, %v869
        %v873 = vmax.f32 %v872, 0.0
        %vm874 = vcmask 130048
        %875 = vst.msk [vmem:[%s269] sm:$0xff] %vm874, %v873
        %s876 = sand.u32 %s181, 1
        %s877 = scalar_lea.sflag [#allocation3], %s876
        %s878 = sand.u32 %s181, 1
        %s879 = smul.addr %s878, 8
        %s880 = scalar_lea.vmem [#allocation2], %s879
        // Predicated region
        $region49: #{tpu_custom_call.1} parent=47 // pred_check
          %p881 = pneg %p191
        $region50: #{tpu_custom_call.1} parent=47 // pred_check_branch
          %883 = sbr.rel (%p881) target = $region52
        $region51: #{tpu_custom_call.1} parent=47 // pred_region
          %s885 = ssub.s32 128, 128
          %886 = vsyncadd %s877, %s885
          %s887 = smul.addr %s21, 128
          %s888 = scalar_lea.hbm %s7, %s887
          %s890 = sshll.u32 %s880, 4
          %s891 = int_to_ptr.vmem [resolvable:$true] %s890
          %893 = dma.vmem_to_hbm [thread:$0]  %s891, 128, %s888, %s877
        $region52: #{tpu_custom_call.1} parent=47 // pred_fallthru
          _
      $region48: #{tpu_custom_call.1} parent=5 // pred_fallthru
        _
      %p894 = scmp.le.s32.totalorder 2, %s16
      // Predicated region
      $region53: #{tpu_custom_call.1} parent=5 // pred_check
        %p895 = pneg %p894
      $region54: #{tpu_custom_call.1} parent=5 // pred_check_branch
        %897 = sbr.rel (%p895) target = $region56
      $region55: #{tpu_custom_call.1} parent=5 // pred_region
        %s898 = ssub.s32 %s16, 2
        // Predicated region
        $region57: #{tpu_custom_call.1} parent=55 // pred_check
          %p899 = pneg %p197
        $region58: #{tpu_custom_call.1} parent=55 // pred_check_branch
          %901 = sbr.rel (%p899) target = $region60
        $region59: #{tpu_custom_call.1} parent=55 // pred_region
          %s902 = sand.u32 %s182, 1
          %s903 = scalar_lea.sflag [#allocation3], %s902
          %s904 = sand.u32 %s182, 1
          %s905 = smul.addr %s904, 8
          %s906 = scalar_lea.vmem [#allocation2], %s905
          %907 = dma.done %s903, 128
        $region60: #{tpu_custom_call.1} parent=55 // pred_fallthru
          _
      $region56: #{tpu_custom_call.1} parent=5 // pred_fallthru
        _
    $region6: #{tpu_custom_call.1} parent=1 // loop_footer
      %s20 = sadd.s32 1, %s16
    $region7: #{tpu_custom_call.1} parent=1 // loop_footer_branch
      %15 = sbr.rel target = $region3
    $region8: #{tpu_custom_call.1} parent=1 // loop_exit
      _
    %908 = vsyncpa [#allocation3], 1
    %s909 = scalar_lea.sflag [#allocation3], 1
    %910 = vsyncpa %s909, 1

</llo_original>
